<compile_context>
chip_gen: v7x
topology: tpu7x:2x2x1
jax: 0.10.0
libtpu: 0.0.40
codegen_flags: <defaults>
</compile_context>

<pallas_src>
import jax
import jax.numpy as jnp
from jax import lax
from jax.experimental import pallas as pl
from jax.experimental.pallas import tpu as pltpu


def _cdiv(a, b):
    return -(-a // b)


def _round_up(x, m):
    return _cdiv(x, m) * m


def _pad_gates(w, H, Hp):
    """Pad the last axis (layout [i|f|g|o], each block H wide) to 4*Hp."""
    lead = w.shape[:-1]
    w4 = w.reshape(lead + (4, H))
    pad_width = [(0, 0)] * len(lead) + [(0, 0), (0, Hp - H)]
    return jnp.pad(w4, pad_width).reshape(lead + (4 * Hp,))


def dkt_lstm_kernel(pre_ref, whh_ref, wout_ref, bout_ref, y_ref,
                    h_sc, c_sc, hs_sc):
    """One (B tile, T tile) block: LSTM recurrence + output head.

    pre_ref : (tt, tb, 4*Hp)  pre-computed input gates (x@W_ih + b), time-major
              (bf16 by default, f32 optional)
    whh_ref : (Hp, 4*Hp)      recurrent weights (bf16 or f32)
    wout_ref: (Hp, Qp)        output weights (bf16 or f32)
    bout_ref: (1, Qp) f32     output bias
    y_ref   : (tt, tb, Qp)    sigmoid(probabilities), time-major
    h_sc/c_sc: (tb, Hp) f32   recurrent state carried across T tiles
    hs_sc   : (tt, tb, Hp) f32 staged hidden states for the bulk output matmul
    """
    tt, tb, _ = pre_ref.shape
    Hp = h_sc.shape[1]
    Qp = y_ref.shape[2]

    # (Re)initialize recurrent state at the start of each batch strip.
    @pl.when(pl.program_id(1) == 0)
    def _():
        h_sc[...] = jnp.zeros_like(h_sc)
        c_sc[...] = jnp.zeros_like(c_sc)

    # Loop-invariant operand, read once (bias already folded into pre_gates).
    whh = whh_ref[...]

    def cell(t, h, c):
        # gates: (tb, 4*Hp) f32 ; only h @ W_hh stays on the serial path.
        gates = pre_ref[t].astype(jnp.float32) + jnp.dot(
            h.astype(whh.dtype), whh, preferred_element_type=jnp.float32)
        # PyTorch LSTM gate order [i, f, g, o]; Hp is a multiple of 128 so
        # each slice is lane-aligned (no sub-vreg shuffles).
        i_g = jax.nn.sigmoid(gates[:, 0 * Hp:1 * Hp])
        f_g = jax.nn.sigmoid(gates[:, 1 * Hp:2 * Hp])
        g_g = jnp.tanh(gates[:, 2 * Hp:3 * Hp])
        o_g = jax.nn.sigmoid(gates[:, 3 * Hp:4 * Hp])
        c_new = f_g * c + i_g * g_g
        h_new = o_g * jnp.tanh(c_new)
        hs_sc[t] = h_new
        return h_new, c_new

    # Manual 2x unroll of the time loop (tt is always a multiple of 8).
    def body(i, carry):
        h, c = carry
        h, c = cell(2 * i, h, c)
        h, c = cell(2 * i + 1, h, c)
        return (h, c)

    h_fin, c_fin = lax.fori_loop(0, tt // 2, body, (h_sc[...], c_sc[...]))
    h_sc[...] = h_fin
    c_sc[...] = c_fin

    # Output head: one large lane-dense matmul + sigmoid + one bulk store.
    wout = wout_ref[...]
    hs = hs_sc[...].reshape(tt * tb, Hp).astype(wout.dtype)
    logits = jnp.dot(hs, wout, preferred_element_type=jnp.float32) + bout_ref[...]
    # TODO(synk): dropout = identity (eval mode).
    y_ref[...] = jax.nn.sigmoid(logits).reshape(tt, tb, Qp).astype(y_ref.dtype)


def dkt_forward(q, r, params, num_q, *, tb=None, tt=None,
                mxu_dtype=jnp.bfloat16, pre_dtype=jnp.bfloat16,
                out_dtype=jnp.float32, num_cores=1, tt_cap=64,
                vmem_budget_bytes=44 * 1024 * 1024):
    """q, r: (B, T) int32.  Returns y: (B, T, num_q) in `out_dtype`."""
    idx = (q + num_q * r).astype(jnp.int32)          # (B, T)
    B, T = idx.shape
    emb = params["emb"]       # (2*num_q, E)
    wih = params["wih"]       # (E, 4H)
    whh = params["whh"]       # (H, 4H)
    b = params["b"]           # (1, 4H) = b_ih + b_hh
    wout = params["wout"]     # (H, num_q)
    bout = params["bout"]     # (1, num_q)
    H = whh.shape[0]

    # Padded sizes for lane/sublane alignment.
    Hp = _round_up(H, 128)
    Qp = _round_up(num_q, 128)

    # ---- tile selection (review: grow tb, minimize T padding, fit VMEM) ----
    Bq = _round_up(B, 8)
    if tb is None:
        tb = min(64, Bq)                      # sweepable: 32..128
        if num_cores > 1:                     # >=2 batch strips for multi-TC
            tb = min(tb, max(8, _round_up(_cdiv(Bq, num_cores), 8)))
    assert tb % 8 == 0
    if tt is None:
        n_tiles = _cdiv(T, tt_cap)
        tt = _round_up(_cdiv(T, n_tiles), 8)  # minimal time padding
    assert tt % 8 == 0

    pre_bytes = jnp.dtype(pre_dtype).itemsize
    w_bytes = jnp.dtype(mxu_dtype).itemsize
    y_bytes = jnp.dtype(out_dtype).itemsize

    def _est_vmem(tb_, tt_):
        return (2 * tt_ * tb_ * 4 * Hp * pre_bytes          # pre (2 buffers)
                + 2 * tt_ * tb_ * Qp * y_bytes               # y   (2 buffers)
                + 2 * (Hp * 4 * Hp + Hp * Qp) * w_bytes      # weights
                + 2 * Qp * 4                                 # bias
                + (2 * tb_ + tt_ * tb_) * Hp * 4)            # scratch

    # Shrink tiles until they fit the (v7x-safe) VMEM budget.
    while _est_vmem(tb, tt) > vmem_budget_bytes and tt > 8:
        tt = max(8, _round_up(tt // 2, 8))
    while _est_vmem(tb, tt) > vmem_budget_bytes and tb > 8:
        tb = max(8, (tb // 2) // 8 * 8)

    Bp = _round_up(B, tb)
    Tp = _round_up(T, tt)
    vmem_limit = int(min(max(int(_est_vmem(tb, tt) * 1.2) + (2 << 20),
                             32 << 20), 98 << 20))

    # --- fold embedding + input projection + bias outside the recurrence ---
    # Padded gate columns get zero pre-activation -> padded hidden units stay
    # exactly 0, so padding does not perturb the real outputs.
    emb_wih = _pad_gates(emb @ wih, H, Hp)                        # (V, 4*Hp) f32
    b_p = _pad_gates(b, H, Hp)                                    # (1, 4*Hp)
    whh_p = _pad_gates(jnp.pad(whh, ((0, Hp - H), (0, 0))), H, Hp)
    whh_p = whh_p.astype(mxu_dtype)                               # (Hp, 4*Hp)
    wout_p = jnp.pad(wout, ((0, Hp - H), (0, Qp - num_q))).astype(mxu_dtype)
    bout_p = jnp.pad(bout, ((0, 0), (0, Qp - num_q))).astype(jnp.float32)

    idx_p = jnp.zeros((Bp, Tp), jnp.int32).at[:B, :T].set(idx)
    # Time-major pre-gates, stored in bf16 (half the dominant HBM stream).
    pre = (jnp.take(emb_wih, idx_p.T, axis=0) + b_p[None]).astype(pre_dtype)

    grid = (Bp // tb, Tp // tt)

    y_tm = pl.pallas_call(
        dkt_lstm_kernel,
        out_shape=jax.ShapeDtypeStruct((Tp, Bp, Qp), out_dtype),
        grid_spec=pltpu.PrefetchScalarGridSpec(
            num_scalar_prefetch=0,
            grid=grid,
            in_specs=[
                pl.BlockSpec((tt, tb, 4 * Hp), lambda bi, ti: (ti, bi, 0)),
                pl.BlockSpec((Hp, 4 * Hp), lambda bi, ti: (0, 0)),
                pl.BlockSpec((Hp, Qp), lambda bi, ti: (0, 0)),
                pl.BlockSpec((1, Qp), lambda bi, ti: (0, 0)),
            ],
            out_specs=pl.BlockSpec((tt, tb, Qp), lambda bi, ti: (ti, bi, 0)),
            scratch_shapes=[
                pltpu.VMEM((tb, Hp), jnp.float32),       # h carry
                pltpu.VMEM((tb, Hp), jnp.float32),       # c carry
                pltpu.VMEM((tt, tb, Hp), jnp.float32),   # staged hidden states
            ],
        ),
        compiler_params=pltpu.CompilerParams(
            # B tiles independent (megacore-parallel), T tiles carry state.
            dimension_semantics=("parallel", "arbitrary"),
            vmem_limit_bytes=vmem_limit,
        ),
    )(pre, whh_p, wout_p, bout_p)

    # Back to batch-major and strip the padding.
    return jnp.transpose(y_tm, (1, 0, 2))[:B, :T, :num_q]


def dkt_reference(q, r, params, num_q):
    """Pure-JAX f32 reference (mirrors PyTorch semantics, eval-mode dropout)."""
    idx = q + num_q * r
    x = params["emb"][idx]                                       # (B, T, E)
    H = params["whh"].shape[0]
    B = q.shape[0]

    def cell(carry, x_t):
        h, c = carry
        gates = x_t @ params["wih"] + h @ params["whh"] + params["b"][0]
        i_g = jax.nn.sigmoid(gates[:, :H])
        f_g = jax.nn.sigmoid(gates[:, H:2 * H])
        g_g = jnp.tanh(gates[:, 2 * H:3 * H])
        o_g = jax.nn.sigmoid(gates[:, 3 * H:])
        c = f_g * c + i_g * g_g
        h = o_g * jnp.tanh(c)
        return (h, c), h

    init = (jnp.zeros((B, H), jnp.float32), jnp.zeros((B, H), jnp.float32))
    _, hs = lax.scan(cell, init, jnp.swapaxes(x, 0, 1))
    hs = jnp.swapaxes(hs, 0, 1)                                  # (B, T, H)
    return jax.nn.sigmoid(hs @ params["wout"] + params["bout"][0])


def init_params(key, num_q, emb_size, hidden_size):
    ks = jax.random.split(key, 6)
    scale = 0.1
    return {
        "emb":  scale * jax.random.normal(ks[0], (2 * num_q, emb_size), jnp.float32),
        "wih":  scale * jax.random.normal(ks[1], (emb_size, 4 * hidden_size), jnp.float32),
        "whh":  scale * jax.random.normal(ks[2], (hidden_size, 4 * hidden_size), jnp.float32),
        # combined bias = b_ih + b_hh
        "b":    scale * jax.random.normal(ks[3], (1, 4 * hidden_size), jnp.float32),
        "wout": scale * jax.random.normal(ks[4], (hidden_size, num_q), jnp.float32),
        "bout": scale * jax.random.normal(ks[5], (1, num_q), jnp.float32),
    }


if __name__ == "__main__":
    key = jax.random.PRNGKey(0)
    k1, k2, k3, k4 = jax.random.split(key, 4)

    # ---- Case 1: small shapes, all-f32 path (tight check) ----
    num_q, emb_size, hidden_size = 16, 32, 32
    B, T = 2, 8
    q = jax.random.randint(k1, (B, T), 0, num_q, dtype=jnp.int32)
    r = jax.random.randint(k2, (B, T), 0, 2, dtype=jnp.int32)
    params = init_params(k3, num_q, emb_size, hidden_size)

    y = dkt_forward(q, r, params, num_q,
                    mxu_dtype=jnp.float32, pre_dtype=jnp.float32)
    jax.block_until_ready(y)
    y_ref = dkt_reference(q, r, params, num_q)
    assert y.shape == (B, T, num_q)
    assert jnp.allclose(y, y_ref, rtol=1e-4, atol=1e-4), "f32 mismatch vs reference"

    # ---- Case 2: non-aligned shapes, default bf16 weights + bf16 pre stream ----
    num_q2, emb2, hid2 = 50, 48, 40
    B2, T2 = 3, 20
    k5, k6, k7, k8 = jax.random.split(k4, 4)
    q2 = jax.random.randint(k5, (B2, T2), 0, num_q2, dtype=jnp.int32)
    r2 = jax.random.randint(k6, (B2, T2), 0, 2, dtype=jnp.int32)
    params2 = init_params(k7, num_q2, emb2, hid2)

    y2 = dkt_forward(q2, r2, params2, num_q2)          # bf16 MXU + bf16 pre
    jax.block_until_ready(y2)
    y2_ref = dkt_reference(q2, r2, params2, num_q2)
    assert y2.shape == (B2, T2, num_q2)
    assert jnp.allclose(y2, y2_ref, rtol=1e-2, atol=1e-2), "bf16 mismatch vs reference"

    # ---- Case 3: multi-tile grid (2 batch strips x 3 time tiles), f32 math ----
    num_q3, emb3, hid3 = 20, 16, 32
    B3, T3 = 10, 40
    k9, k10, k11 = jax.random.split(k8, 3)
    q3 = jax.random.randint(k9, (B3, T3), 0, num_q3, dtype=jnp.int32)
    r3 = jax.random.randint(k10, (B3, T3), 0, 2, dtype=jnp.int32)
    params3 = init_params(k11, num_q3, emb3, hid3)

    y3 = dkt_forward(q3, r3, params3, num_q3, tb=8, tt=16,
                     mxu_dtype=jnp.float32, pre_dtype=jnp.float32, num_cores=2)
    jax.block_until_ready(y3)
    y3_ref = dkt_reference(q3, r3, params3, num_q3)
    assert y3.shape == (B3, T3, num_q3)
    assert jnp.allclose(y3, y3_ref, rtol=1e-4, atol=1e-4), "multi-tile mismatch vs reference"

    print("KERNEL_OK")
</pallas_src>

<mosaic_0001>
module attributes {stable_mosaic.version = 11 : i64} {
  func.func @dkt_lstm_kernel(%arg0: i32, %arg1: i32, %arg2: memref<8x8x512xf32, #tpu.memory_space<vmem>>, %arg3: memref<128x512xf32, #tpu.memory_space<vmem>>, %arg4: memref<128x128xf32, #tpu.memory_space<vmem>>, %arg5: memref<1x128xf32, #tpu.memory_space<vmem>>, %arg6: memref<8x8x128xf32, #tpu.memory_space<vmem>>, %arg7: memref<8x128xf32, #tpu.memory_space<vmem>>, %arg8: memref<8x128xf32, #tpu.memory_space<vmem>>, %arg9: memref<8x8x128xf32, #tpu.memory_space<vmem>>) attributes {dimension_semantics = [#tpu.dimension_semantics<parallel>, #tpu.dimension_semantics<arbitrary>], iteration_bounds = array<i64: 1, 1>, scalar_prefetch = 0 : i64, scratch_operands = 3 : i64, tpu.core_type = #tpu.core_type<tc>, window_params = [{transform_indices = @transform_0, window_bounds = array<i64: 8, 8, 512>}, {pipeline_mode = #tpu.pipeline_mode<synchronous>, transform_indices = @transform_1, window_bounds = array<i64: 128, 512>}, {pipeline_mode = #tpu.pipeline_mode<synchronous>, transform_indices = @transform_2, window_bounds = array<i64: 128, 128>}, {pipeline_mode = #tpu.pipeline_mode<synchronous>, transform_indices = @transform_3, window_bounds = array<i64: 1, 128>}, {transform_indices = @transform_4, window_bounds = array<i64: 8, 8, 128>}]} {
    %c0_i32 = arith.constant 0 : i32
    %0 = arith.cmpi eq, %arg1, %c0_i32 : i32
    %1 = arith.extui %0 : i1 to i32
    %c0_i32_0 = arith.constant 0 : i32
    %2 = arith.cmpi ne, %1, %c0_i32_0 : i32
    scf.if %2 {
      %cst_23 = arith.constant 0.000000e+00 : f32
      %24 = vector.broadcast %cst_23 : f32 to vector<8x128xf32>
      %c0_24 = arith.constant 0 : index
      %c0_25 = arith.constant 0 : index
      %25 = vector.load %arg7[%c0_24, %c0_25] : memref<8x128xf32, #tpu.memory_space<vmem>>, vector<8x128xf32>
      tpu.vector_store %arg7[%c0_24, %c0_25], %24 {strides = array<i32>} : memref<8x128xf32, #tpu.memory_space<vmem>>, vector<8x128xf32>,
      %cst_26 = arith.constant 0.000000e+00 : f32
      %26 = vector.broadcast %cst_26 : f32 to vector<8x128xf32>
      %c0_27 = arith.constant 0 : index
      %c0_28 = arith.constant 0 : index
      %27 = vector.load %arg8[%c0_27, %c0_28] : memref<8x128xf32, #tpu.memory_space<vmem>>, vector<8x128xf32>
      tpu.vector_store %arg8[%c0_27, %c0_28], %26 {strides = array<i32>} : memref<8x128xf32, #tpu.memory_space<vmem>>, vector<8x128xf32>,
    } else {
    }
    %c0 = arith.constant 0 : index
    %c0_1 = arith.constant 0 : index
    %3 = vector.load %arg3[%c0, %c0_1] : memref<128x512xf32, #tpu.memory_space<vmem>>, vector<128x512xf32>
    %c0_2 = arith.constant 0 : index
    %c0_3 = arith.constant 0 : index
    %4 = vector.load %arg7[%c0_2, %c0_3] : memref<8x128xf32, #tpu.memory_space<vmem>>, vector<8x128xf32>
    %c0_4 = arith.constant 0 : index
    %c0_5 = arith.constant 0 : index
    %5 = vector.load %arg8[%c0_4, %c0_5] : memref<8x128xf32, #tpu.memory_space<vmem>>, vector<8x128xf32>
    %c0_i32_6 = arith.constant 0 : i32
    %c4_i32 = arith.constant 4 : i32
    %6 = arith.addi %c0_i32_6, %c4_i32 : i32
    %c1_i32 = arith.constant 1 : i32
    %7:2 = scf.for %arg10 = %c0_i32_6 to %6 step %c1_i32 iter_args(%arg11 = %4, %arg12 = %5) -> (vector<8x128xf32>, vector<8x128xf32>)  : i32 {
      %c2_i32 = arith.constant 2 : i32
      %24 = arith.muli %c2_i32, %arg10 : i32
      %25 = arith.index_cast %24 : i32 to index
      %c0_23 = arith.constant 0 : index
      %c0_24 = arith.constant 0 : index
      %26 = vector.load %arg2[%25, %c0_23, %c0_24] : memref<8x8x512xf32, #tpu.memory_space<vmem>>, vector<1x8x512xf32>
      %27 = vector.shape_cast %26 : vector<1x8x512xf32> to vector<8x512xf32>
      %cst_25 = arith.constant dense<0.000000e+00> : vector<8x512xf32>
      %28 = tpu.matmul %arg11, %3, %cst_25 {dimension_numbers = #tpu.dot_dimension_numbers<[1], [0], [0], [1], [0, 0, 1, 1], [], []>} : vector<8x128xf32>, vector<128x512xf32>, vector<8x512xf32> -> vector<8x512xf32>
      %29 = arith.addf %27, %28 : vector<8x512xf32>
      %30 = vector.extract_strided_slice %29 {offsets = [0, 0], sizes = [8, 128], strides = [1, 1]} : vector<8x512xf32> to vector<8x128xf32>
      %31 = arith.negf %30 : vector<8x128xf32>
      %32 = math.exp %31 : vector<8x128xf32>
      %cst_26 = arith.constant 1.000000e+00 : f32
      %33 = vector.broadcast %cst_26 : f32 to vector<8x128xf32>
      %34 = arith.addf %33, %32 : vector<8x128xf32>
      %35 = arith.divf %33, %34 : vector<8x128xf32>
      %36 = vector.extract_strided_slice %29 {offsets = [0, 128], sizes = [8, 128], strides = [1, 1]} : vector<8x512xf32> to vector<8x128xf32>
      %37 = arith.negf %36 : vector<8x128xf32>
      %38 = math.exp %37 : vector<8x128xf32>
      %cst_27 = arith.constant 1.000000e+00 : f32
      %39 = vector.broadcast %cst_27 : f32 to vector<8x128xf32>
      %40 = arith.addf %39, %38 : vector<8x128xf32>
      %41 = arith.divf %39, %40 : vector<8x128xf32>
      %42 = vector.extract_strided_slice %29 {offsets = [0, 256], sizes = [8, 128], strides = [1, 1]} : vector<8x512xf32> to vector<8x128xf32>
      %43 = math.tanh %42 : vector<8x128xf32>
      %44 = vector.extract_strided_slice %29 {offsets = [0, 384], sizes = [8, 128], strides = [1, 1]} : vector<8x512xf32> to vector<8x128xf32>
      %45 = arith.negf %44 : vector<8x128xf32>
      %46 = math.exp %45 : vector<8x128xf32>
      %cst_28 = arith.constant 1.000000e+00 : f32
      %47 = vector.broadcast %cst_28 : f32 to vector<8x128xf32>
      %48 = arith.addf %47, %46 : vector<8x128xf32>
      %49 = arith.divf %47, %48 : vector<8x128xf32>
      %50 = arith.mulf %41, %arg12 : vector<8x128xf32>
      %51 = arith.mulf %35, %43 : vector<8x128xf32>
      %52 = arith.addf %50, %51 : vector<8x128xf32>
      %53 = math.tanh %52 : vector<8x128xf32>
      %54 = arith.mulf %49, %53 : vector<8x128xf32>
      %55 = arith.index_cast %24 : i32 to index
      %c0_29 = arith.constant 0 : index
      %c0_30 = arith.constant 0 : index
      %56 = vector.load %arg9[%55, %c0_29, %c0_30] : memref<8x8x128xf32, #tpu.memory_space<vmem>>, vector<1x8x128xf32>
      %57 = vector.shape_cast %56 : vector<1x8x128xf32> to vector<8x128xf32>
      %58 = vector.shape_cast %54 : vector<8x128xf32> to vector<1x8x128xf32>
      tpu.vector_store %arg9[%55, %c0_29, %c0_30], %58 {strides = array<i32>} : memref<8x8x128xf32, #tpu.memory_space<vmem>>, vector<1x8x128xf32>,
      %c2_i32_31 = arith.constant 2 : i32
      %59 = arith.muli %c2_i32_31, %arg10 : i32
      %c1_i32_32 = arith.constant 1 : i32
      %60 = arith.addi %59, %c1_i32_32 : i32
      %61 = arith.index_cast %60 : i32 to index
      %c0_33 = arith.constant 0 : index
      %c0_34 = arith.constant 0 : index
      %62 = vector.load %arg2[%61, %c0_33, %c0_34] : memref<8x8x512xf32, #tpu.memory_space<vmem>>, vector<1x8x512xf32>
      %63 = vector.shape_cast %62 : vector<1x8x512xf32> to vector<8x512xf32>
      %cst_35 = arith.constant dense<0.000000e+00> : vector<8x512xf32>
      %64 = tpu.matmul %54, %3, %cst_35 {dimension_numbers = #tpu.dot_dimension_numbers<[1], [0], [0], [1], [0, 0, 1, 1], [], []>} : vector<8x128xf32>, vector<128x512xf32>, vector<8x512xf32> -> vector<8x512xf32>
      %65 = arith.addf %63, %64 : vector<8x512xf32>
      %66 = vector.extract_strided_slice %65 {offsets = [0, 0], sizes = [8, 128], strides = [1, 1]} : vector<8x512xf32> to vector<8x128xf32>
      %67 = arith.negf %66 : vector<8x128xf32>
      %68 = math.exp %67 : vector<8x128xf32>
      %cst_36 = arith.constant 1.000000e+00 : f32
      %69 = vector.broadcast %cst_36 : f32 to vector<8x128xf32>
      %70 = arith.addf %69, %68 : vector<8x128xf32>
      %71 = arith.divf %69, %70 : vector<8x128xf32>
      %72 = vector.extract_strided_slice %65 {offsets = [0, 128], sizes = [8, 128], strides = [1, 1]} : vector<8x512xf32> to vector<8x128xf32>
      %73 = arith.negf %72 : vector<8x128xf32>
      %74 = math.exp %73 : vector<8x128xf32>
      %cst_37 = arith.constant 1.000000e+00 : f32
      %75 = vector.broadcast %cst_37 : f32 to vector<8x128xf32>
      %76 = arith.addf %75, %74 : vector<8x128xf32>
      %77 = arith.divf %75, %76 : vector<8x128xf32>
      %78 = vector.extract_strided_slice %65 {offsets = [0, 256], sizes = [8, 128], strides = [1, 1]} : vector<8x512xf32> to vector<8x128xf32>
      %79 = math.tanh %78 : vector<8x128xf32>
      %80 = vector.extract_strided_slice %65 {offsets = [0, 384], sizes = [8, 128], strides = [1, 1]} : vector<8x512xf32> to vector<8x128xf32>
      %81 = arith.negf %80 : vector<8x128xf32>
      %82 = math.exp %81 : vector<8x128xf32>
      %cst_38 = arith.constant 1.000000e+00 : f32
      %83 = vector.broadcast %cst_38 : f32 to vector<8x128xf32>
      %84 = arith.addf %83, %82 : vector<8x128xf32>
      %85 = arith.divf %83, %84 : vector<8x128xf32>
      %86 = arith.mulf %77, %52 : vector<8x128xf32>
      %87 = arith.mulf %71, %79 : vector<8x128xf32>
      %88 = arith.addf %86, %87 : vector<8x128xf32>
      %89 = math.tanh %88 : vector<8x128xf32>
      %90 = arith.mulf %85, %89 : vector<8x128xf32>
      %91 = arith.index_cast %60 : i32 to index
      %c0_39 = arith.constant 0 : index
      %c0_40 = arith.constant 0 : index
      %92 = vector.load %arg9[%91, %c0_39, %c0_40] : memref<8x8x128xf32, #tpu.memory_space<vmem>>, vector<1x8x128xf32>
      %93 = vector.shape_cast %92 : vector<1x8x128xf32> to vector<8x128xf32>
      %94 = vector.shape_cast %90 : vector<8x128xf32> to vector<1x8x128xf32>
      tpu.vector_store %arg9[%91, %c0_39, %c0_40], %94 {strides = array<i32>} : memref<8x8x128xf32, #tpu.memory_space<vmem>>, vector<1x8x128xf32>,
      scf.yield %90, %88 : vector<8x128xf32>, vector<8x128xf32>
    }
    %c4_i32_7 = arith.constant 4 : i32
    %c0_8 = arith.constant 0 : index
    %c0_9 = arith.constant 0 : index
    %8 = vector.load %arg7[%c0_8, %c0_9] : memref<8x128xf32, #tpu.memory_space<vmem>>, vector<8x128xf32>
    tpu.vector_store %arg7[%c0_8, %c0_9], %7#0 {strides = array<i32>} : memref<8x128xf32, #tpu.memory_space<vmem>>, vector<8x128xf32>,
    %c0_10 = arith.constant 0 : index
    %c0_11 = arith.constant 0 : index
    %9 = vector.load %arg8[%c0_10, %c0_11] : memref<8x128xf32, #tpu.memory_space<vmem>>, vector<8x128xf32>
    tpu.vector_store %arg8[%c0_10, %c0_11], %7#1 {strides = array<i32>} : memref<8x128xf32, #tpu.memory_space<vmem>>, vector<8x128xf32>,
    %c0_12 = arith.constant 0 : index
    %c0_13 = arith.constant 0 : index
    %10 = vector.load %arg4[%c0_12, %c0_13] : memref<128x128xf32, #tpu.memory_space<vmem>>, vector<128x128xf32>
    %c0_14 = arith.constant 0 : index
    %c0_15 = arith.constant 0 : index
    %c0_16 = arith.constant 0 : index
    %11 = vector.load %arg9[%c0_14, %c0_15, %c0_16] : memref<8x8x128xf32, #tpu.memory_space<vmem>>, vector<8x8x128xf32>
    %12 = vector.shape_cast %11 : vector<8x8x128xf32> to vector<64x128xf32>
    %cst = arith.constant dense<0.000000e+00> : vector<64x128xf32>
    %13 = tpu.matmul %12, %10, %cst {dimension_numbers = #tpu.dot_dimension_numbers<[1], [0], [0], [1], [0, 0, 1, 1], [], []>} : vector<64x128xf32>, vector<128x128xf32>, vector<64x128xf32> -> vector<64x128xf32>
    %c0_17 = arith.constant 0 : index
    %c0_18 = arith.constant 0 : index
    %14 = vector.load %arg5[%c0_17, %c0_18] : memref<1x128xf32, #tpu.memory_space<vmem>>, vector<1x128xf32>
    %15 = vector.broadcast %14 : vector<1x128xf32> to vector<64x128xf32>
    %16 = arith.addf %13, %15 : vector<64x128xf32>
    %17 = arith.negf %16 : vector<64x128xf32>
    %18 = math.exp %17 : vector<64x128xf32>
    %cst_19 = arith.constant 1.000000e+00 : f32
    %19 = vector.broadcast %cst_19 : f32 to vector<64x128xf32>
    %20 = arith.addf %19, %18 : vector<64x128xf32>
    %21 = arith.divf %19, %20 : vector<64x128xf32>
    %22 = vector.shape_cast %21 : vector<64x128xf32> to vector<8x8x128xf32>
    %c0_20 = arith.constant 0 : index
    %c0_21 = arith.constant 0 : index
    %c0_22 = arith.constant 0 : index
    %23 = vector.load %arg6[%c0_20, %c0_21, %c0_22] : memref<8x8x128xf32, #tpu.memory_space<vmem>>, vector<8x8x128xf32>
    tpu.vector_store %arg6[%c0_20, %c0_21, %c0_22], %22 {strides = array<i32>} : memref<8x8x128xf32, #tpu.memory_space<vmem>>, vector<8x8x128xf32>,
    return
  }
  func.func @transform_0(%arg0: i32, %arg1: i32) -> (i32, i32, i32) {
    %c0_i32 = arith.constant 0 : i32
    %c0_i32_0 = arith.constant 0 : i32
    return %arg1, %arg0, %c0_i32 : i32, i32, i32
  }
  func.func @transform_1(%arg0: i32, %arg1: i32) -> (i32, i32) {
    %c0_i32 = arith.constant 0 : i32
    %c0_i32_0 = arith.constant 0 : i32
    %c0_i32_1 = arith.constant 0 : i32
    return %c0_i32, %c0_i32_0 : i32, i32
  }
  func.func @transform_2(%arg0: i32, %arg1: i32) -> (i32, i32) {
    %c0_i32 = arith.constant 0 : i32
    %c0_i32_0 = arith.constant 0 : i32
    %c0_i32_1 = arith.constant 0 : i32
    return %c0_i32, %c0_i32_0 : i32, i32
  }
  func.func @transform_3(%arg0: i32, %arg1: i32) -> (i32, i32) {
    %c0_i32 = arith.constant 0 : i32
    %c0_i32_0 = arith.constant 0 : i32
    %c0_i32_1 = arith.constant 0 : i32
    return %c0_i32, %c0_i32_0 : i32, i32
  }
  func.func @transform_4(%arg0: i32, %arg1: i32) -> (i32, i32, i32) {
    %c0_i32 = arith.constant 0 : i32
    %c0_i32_0 = arith.constant 0 : i32
    return %arg1, %arg0, %c0_i32 : i32, i32, i32
  }
}

</mosaic_0001>

<llo_original>
// kernel: tpu_custom_call.1
$region0: #{tpu_custom_call.1}
  #allocation0 [shape = 'u32[]', space=smem, size = 0x4, offset = 0x4, fixed_abs, tag = 'smem constant byte address 0x4 - core index']
  #allocation1 [shape = 'u32[144,128]{1,0:T(1,128)}', space=vmem, size = 0x12000, scoped, tag = 'internal scratch']
  #allocation2 [shape = 'f32[8,128]{1,0:T(8,128)}', space=vmem, size = 0x1000, scoped, tag = 'scratch operand']
  #allocation3 [shape = 'f32[8,128]{1,0:T(8,128)}', space=vmem, size = 0x1000, scoped, tag = 'scratch operand']
  #allocation4 [shape = 'f32[8,8,128]{2,1,0:T(8,128)}', space=vmem, size = 0x8000, scoped, tag = 'scratch operand']
  %s0 = inlined_call_operand.hbm [shape: f32[8,8,512], index: 0, kind: input, shape index: {}]
  %s1 = inlined_call_operand.hbm [shape: f32[128,512], index: 1, kind: input, shape index: {}]
  %s2 = inlined_call_operand.hbm [shape: f32[128,128], index: 2, kind: input, shape index: {}]
  %s3 = inlined_call_operand.vmem [shape: f32[1,128], index: 3, kind: input, shape index: {}]
  %s4 = inlined_call_operand.hbm [shape: f32[8,8,128], index: 4, kind: output, shape index: {}]
  %s5 = sld [smem:[#allocation0]]
  $region49: #{tpu_custom_call.1} parent=0
    _
  %s7 = ssub.s32 1, %s5
  %s8 = scalar_select 0, %s7, %s5
  $region1: #{tpu_custom_call.1} parent=0
    #allocation5 [shape = 'u8[131072]{0}', space=vmem, size = 0x20000, scoped, tag = 'input window, operand 0, single buffered']
    #allocation6 [shape = 's32[1]{0}', space=sflag, size = 0x4, scoped, tag = 'scoped memory for tpu_custom_call.1']
    #allocation7 [shape = 's32[1]{0}', space=sflag, size = 0x4, scoped, tag = 'scoped memory for tpu_custom_call.1']
    #allocation8 [shape = 'u8[262144]{0}', space=vmem, size = 0x40000, scoped, tag = 'input window, operand 1, single buffered']
    #allocation9 [shape = 's32[1]{0}', space=sflag, size = 0x4, scoped, tag = 'scoped memory for tpu_custom_call.1']
    #allocation10 [shape = 'u8[65536]{0}', space=vmem, size = 0x10000, scoped, tag = 'input window, operand 2, single buffered']
    #allocation11 [shape = 'u8[32768]{0}', space=vmem, size = 0x8000, scoped, tag = 'output window, operand 0, single buffered']
    %9 = vsyncpa [#allocation6], 0
    %10 = vsyncpa [#allocation9], 0
    %11 = vsyncpa [#allocation7], 0
    // Predicated region
    $region2: #{tpu_custom_call.1} parent=1 // pred_check
      _
    $region3: #{tpu_custom_call.1} parent=1 // pred_check_branch
      %13 = sbr.rel (0) target = $region5
    $region4: #{tpu_custom_call.1} parent=1 // pred_region
      %s15 = ssub.s32 4096, 4096
      %16 = vsyncadd [#allocation6], %s15
      %s17 = sshll.u32 [#allocation5], 4
      %s18 = int_to_ptr.vmem [resolvable:$true] %s17
      %23 = dma.hbm_to_vmem [thread:$0]  %s0, 4096, %s18, [#allocation6], 512, 512, 32
    $region5: #{tpu_custom_call.1} parent=1 // pred_fallthru
      _
    // Predicated region
    $region6: #{tpu_custom_call.1} parent=1 // pred_check
      _
    $region7: #{tpu_custom_call.1} parent=1 // pred_check_branch
      %25 = sbr.rel (0) target = $region9
    $region8: #{tpu_custom_call.1} parent=1 // pred_region
      %s27 = ssub.s32 8192, 8192
      %28 = vsyncadd [#allocation9], %s27
      %s29 = sshll.u32 [#allocation8], 4
      %s30 = int_to_ptr.vmem [resolvable:$true] %s29
      %35 = dma.hbm_to_vmem [thread:$0]  %s1, 8192, %s30, [#allocation9], 512, 512, 32
    $region9: #{tpu_custom_call.1} parent=1 // pred_fallthru
      _
    // Predicated region
    $region10: #{tpu_custom_call.1} parent=1 // pred_check
      _
    $region11: #{tpu_custom_call.1} parent=1 // pred_check_branch
      %37 = sbr.rel (0) target = $region13
    $region12: #{tpu_custom_call.1} parent=1 // pred_region
      %s39 = ssub.s32 2048, 2048
      %40 = vsyncadd [#allocation9], %s39
      %s41 = sshll.u32 [#allocation10], 4
      %s42 = int_to_ptr.vmem [resolvable:$true] %s41
      %47 = dma.hbm_to_vmem [thread:$0]  %s2, 2048, %s42, [#allocation9], 128, 128, 8
    $region13: #{tpu_custom_call.1} parent=1 // pred_fallthru
      _
    // Predicated region
    $region14: #{tpu_custom_call.1} parent=1 // pred_check
      _
    $region15: #{tpu_custom_call.1} parent=1 // pred_check_branch
      %49 = sbr.rel (0) target = $region17
    $region16: #{tpu_custom_call.1} parent=1 // pred_region
      _
    $region17: #{tpu_custom_call.1} parent=1 // pred_fallthru
      _
    // Predicated region
    $region18: #{tpu_custom_call.1} parent=1 // pred_check
      _
    $region19: #{tpu_custom_call.1} parent=1 // pred_check_branch
      %51 = sbr.rel (0) target = $region21
    $region20: #{tpu_custom_call.1} parent=1 // pred_region
      %52 = dma.done [#allocation6], 4096
    $region21: #{tpu_custom_call.1} parent=1 // pred_fallthru
      _
    // Predicated region
    $region22: #{tpu_custom_call.1} parent=1 // pred_check
      _
    $region23: #{tpu_custom_call.1} parent=1 // pred_check_branch
      %54 = sbr.rel (0) target = $region25
    $region24: #{tpu_custom_call.1} parent=1 // pred_region
      %55 = dma.done [#allocation9], 8192
    $region25: #{tpu_custom_call.1} parent=1 // pred_fallthru
      _
    // Predicated region
    $region26: #{tpu_custom_call.1} parent=1 // pred_check
      _
    $region27: #{tpu_custom_call.1} parent=1 // pred_check_branch
      %57 = sbr.rel (0) target = $region29
    $region28: #{tpu_custom_call.1} parent=1 // pred_region
      %58 = dma.done [#allocation9], 2048
    $region29: #{tpu_custom_call.1} parent=1 // pred_fallthru
      _
    %p59 = scmp.eq.s32.totalorder 0, 0
    // Predicated region
    $region30: #{tpu_custom_call.1} parent=1 // pred_check
      %p60 = pneg %p59
    $region31: #{tpu_custom_call.1} parent=1 // pred_check_branch
      %62 = sbr.rel (%p60) target = $region33
    $region32: #{tpu_custom_call.1} parent=1 // pred_region
      %63 = vst [vmem:[#allocation2] sm:$0xff] 0.0
      %64 = vst [vmem:[#allocation3] sm:$0xff] 0.0
    $region33: #{tpu_custom_call.1} parent=1 // pred_fallthru
      _
    %v65 = vld [vmem:[#allocation8] sm:$0xff]
    %v66 = vld [vmem:[#allocation8 + $0x8] sm:$0xff]
    %v67 = vld [vmem:[#allocation8 + $0x10] sm:$0xff]
    %v68 = vld [vmem:[#allocation8 + $0x18] sm:$0xff]
    %v69 = vld [vmem:[#allocation8 + $0x20] sm:$0xff]
    %v70 = vld [vmem:[#allocation8 + $0x28] sm:$0xff]
    %v71 = vld [vmem:[#allocation8 + $0x30] sm:$0xff]
    %v72 = vld [vmem:[#allocation8 + $0x38] sm:$0xff]
    %v73 = vld [vmem:[#allocation8 + $0x40] sm:$0xff]
    %v74 = vld [vmem:[#allocation8 + $0x48] sm:$0xff]
    %v75 = vld [vmem:[#allocation8 + $0x50] sm:$0xff]
    %v76 = vld [vmem:[#allocation8 + $0x58] sm:$0xff]
    %v77 = vld [vmem:[#allocation8 + $0x60] sm:$0xff]
    %v78 = vld [vmem:[#allocation8 + $0x68] sm:$0xff]
    %v79 = vld [vmem:[#allocation8 + $0x70] sm:$0xff]
    %v80 = vld [vmem:[#allocation8 + $0x78] sm:$0xff]
    %v81 = vld [vmem:[#allocation8 + $0x80] sm:$0xff]
    %v82 = vld [vmem:[#allocation8 + $0x88] sm:$0xff]
    %v83 = vld [vmem:[#allocation8 + $0x90] sm:$0xff]
    %v84 = vld [vmem:[#allocation8 + $0x98] sm:$0xff]
    %v85 = vld [vmem:[#allocation8 + $0xa0] sm:$0xff]
    %v86 = vld [vmem:[#allocation8 + $0xa8] sm:$0xff]
    %v87 = vld [vmem:[#allocation8 + $0xb0] sm:$0xff]
    %v88 = vld [vmem:[#allocation8 + $0xb8] sm:$0xff]
    %v89 = vld [vmem:[#allocation8 + $0xc0] sm:$0xff]
    %v90 = vld [vmem:[#allocation8 + $0xc8] sm:$0xff]
    %v91 = vld [vmem:[#allocation8 + $0xd0] sm:$0xff]
    %v92 = vld [vmem:[#allocation8 + $0xd8] sm:$0xff]
    %v93 = vld [vmem:[#allocation8 + $0xe0] sm:$0xff]
    %v94 = vld [vmem:[#allocation8 + $0xe8] sm:$0xff]
    %v95 = vld [vmem:[#allocation8 + $0xf0] sm:$0xff]
    %v96 = vld [vmem:[#allocation8 + $0xf8] sm:$0xff]
    %v97 = vld [vmem:[#allocation8 + $0x100] sm:$0xff]
    %v98 = vld [vmem:[#allocation8 + $0x108] sm:$0xff]
    %v99 = vld [vmem:[#allocation8 + $0x110] sm:$0xff]
    %v100 = vld [vmem:[#allocation8 + $0x118] sm:$0xff]
    %v101 = vld [vmem:[#allocation8 + $0x120] sm:$0xff]
    %v102 = vld [vmem:[#allocation8 + $0x128] sm:$0xff]
    %v103 = vld [vmem:[#allocation8 + $0x130] sm:$0xff]
    %v104 = vld [vmem:[#allocation8 + $0x138] sm:$0xff]
    %v105 = vld [vmem:[#allocation8 + $0x140] sm:$0xff]
    %v106 = vld [vmem:[#allocation8 + $0x148] sm:$0xff]
    %v107 = vld [vmem:[#allocation8 + $0x150] sm:$0xff]
    %v108 = vld [vmem:[#allocation8 + $0x158] sm:$0xff]
    %v109 = vld [vmem:[#allocation8 + $0x160] sm:$0xff]
    %v110 = vld [vmem:[#allocation8 + $0x168] sm:$0xff]
    %v111 = vld [vmem:[#allocation8 + $0x170] sm:$0xff]
    %v112 = vld [vmem:[#allocation8 + $0x178] sm:$0xff]
    %v113 = vld [vmem:[#allocation8 + $0x180] sm:$0xff]
    %v114 = vld [vmem:[#allocation8 + $0x188] sm:$0xff]
    %v115 = vld [vmem:[#allocation8 + $0x190] sm:$0xff]
    %v116 = vld [vmem:[#allocation8 + $0x198] sm:$0xff]
    %v117 = vld [vmem:[#allocation8 + $0x1a0] sm:$0xff]
    %v118 = vld [vmem:[#allocation8 + $0x1a8] sm:$0xff]
    %v119 = vld [vmem:[#allocation8 + $0x1b0] sm:$0xff]
    %v120 = vld [vmem:[#allocation8 + $0x1b8] sm:$0xff]
    %v121 = vld [vmem:[#allocation8 + $0x1c0] sm:$0xff]
    %v122 = vld [vmem:[#allocation8 + $0x1c8] sm:$0xff]
    %v123 = vld [vmem:[#allocation8 + $0x1d0] sm:$0xff]
    %v124 = vld [vmem:[#allocation8 + $0x1d8] sm:$0xff]
    %v125 = vld [vmem:[#allocation8 + $0x1e0] sm:$0xff]
    %v126 = vld [vmem:[#allocation8 + $0x1e8] sm:$0xff]
    %v127 = vld [vmem:[#allocation8 + $0x1f0] sm:$0xff]
    %v128 = vld [vmem:[#allocation8 + $0x1f8] sm:$0xff]
    %v129 = vld [vmem:[#allocation2] sm:$0xff]
    %v130 = vld [vmem:[#allocation3] sm:$0xff]
    loop: start=0, step=1, limit=4
    $region34: #{tpu_custom_call.1} parent=1 // loop_pre_header
      _
    $region35: #{tpu_custom_call.1} parent=1 // loop_header
      %s132 = sphi 0, %s136
      %p133 = scmp.ge.s32.totalorder %s132, 4
      %v137 = vphi %v129, %v497
      %v138 = vphi %v130, %v495
    $region36: #{tpu_custom_call.1} parent=1 // loop_header_branch
      %135 = sbr.rel (%p133) target = $region40
    $region37: #{tpu_custom_call.1} parent=1 // loop_body
      %s139 = smul.u32 %s132, 2
      %s140 = smul.u32 %s139, 4
      %s141 = smul.addr %s140, 8
      %s142 = scalar_lea.vmem [#allocation5], %s141
      %v143 = vld [vmem:[%s142] sm:$0xff]
      %v144 = vld [vmem:[%s142 + $0x8] sm:$0xff]
      %v145 = vld [vmem:[%s142 + $0x10] sm:$0xff]
      %v146 = vld [vmem:[%s142 + $0x18] sm:$0xff]
      %147 = vmatprep.subr.mxu0 %v66
      %148 = vmatpush1.msra.mxu0 %v65
      %149 = vmatprep.subr.mxu0 %v70
      %150 = vmatpush1.msra.mxu0 %v69
      %151 = vmatprep.subr.mxu0 %v74
      %152 = vmatpush1.msra.mxu0 %v73
      %153 = vmatprep.subr.mxu0 %v78
      %154 = vmatpush1.msra.mxu0 %v77
      %155 = vmatprep.subr.mxu0 %v82
      %156 = vmatpush1.msra.mxu0 %v81
      %157 = vmatprep.subr.mxu0 %v86
      %158 = vmatpush1.msra.mxu0 %v85
      %159 = vmatprep.subr.mxu0 %v90
      %160 = vmatpush1.msra.mxu0 %v89
      %161 = vmatprep.subr.mxu0 %v94
      %162 = vmatpush1.msra.mxu0 %v93
      %163 = vmatprep.subr.mxu0 %v98
      %164 = vmatpush1.msra.mxu0 %v97
      %165 = vmatprep.subr.mxu0 %v102
      %166 = vmatpush1.msra.mxu0 %v101
      %167 = vmatprep.subr.mxu0 %v106
      %168 = vmatpush1.msra.mxu0 %v105
      %169 = vmatprep.subr.mxu0 %v110
      %170 = vmatpush1.msra.mxu0 %v109
      %171 = vmatprep.subr.mxu0 %v114
      %172 = vmatpush1.msra.mxu0 %v113
      %173 = vmatprep.subr.mxu0 %v118
      %174 = vmatpush1.msra.mxu0 %v117
      %175 = vmatprep.subr.mxu0 %v122
      %176 = vmatpush1.msra.mxu0 %v121
      %177 = vmatprep.subr.mxu0 %v126
      %178 = vmatpush1.msra.mxu0 %v125
      %179 = vmatprep.subr.mxu0 0.0
      %180 = vmatpush1.msra.mxu0 0.0
      %181 = vmatprep.subr.mxu0 0.0
      %182 = vmatpush1.msra.mxu0 0.0
      %183 = vmatprep.subr.mxu0 0.0
      %184 = vmatpush1.msra.mxu0 0.0
      %185 = vmatprep.subr.mxu0 0.0
      %186 = vmatpush1.msra.mxu0 0.0
      %187 = vmatprep.subr.mxu0 0.0
      %188 = vmatpush1.msra.mxu0 0.0
      %189 = vmatprep.subr.mxu0 0.0
      %190 = vmatpush1.msra.mxu0 0.0
      %191 = vmatprep.subr.mxu0 0.0
      %192 = vmatpush1.msra.mxu0 0.0
      %193 = vmatprep.subr.mxu0 0.0
      %194 = vmatpush1.msra.mxu0 0.0
      %195 = vmatprep.subr.mxu0 0.0
      %196 = vmatpush1.msra.mxu0 0.0
      %197 = vmatprep.subr.mxu0 0.0
      %198 = vmatpush1.msra.mxu0 0.0
      %199 = vmatprep.subr.mxu0 0.0
      %200 = vmatpush1.msra.mxu0 0.0
      %201 = vmatprep.subr.mxu0 0.0
      %202 = vmatpush1.msra.mxu0 0.0
      %203 = vmatprep.subr.mxu0 0.0
      %204 = vmatpush1.msra.mxu0 0.0
      %205 = vmatprep.subr.mxu0 0.0
      %206 = vmatpush1.msra.mxu0 0.0
      %207 = vmatprep.subr.mxu0 0.0
      %208 = vmatpush1.msra.mxu0 0.0
      %209 = vmatprep.subr.mxu0 0.0
      %210 = vmatpush1.msra.mxu0 0.0
      %211 = vmatprep.mubr.f32.mxu0 0.0
      %212 = vmatmul.mubr.f32.gmra.mrb[0].mxu0 %v137
      %v213 = vpop.f32.mrb[0].mxu0
      %v214 = vadd.f32 0.0, %v213
      %v215 = vpop.f32.mrb[0].mxu0
      %v216 = vadd.f32 0.0, %v215
      %217 = vdwg.mxu0
      %218 = vmatprep.subr.mxu0 %v68
      %219 = vmatpush1.msra.mxu0 %v67
      %220 = vmatprep.subr.mxu0 %v72
      %221 = vmatpush1.msra.mxu0 %v71
      %222 = vmatprep.subr.mxu0 %v76
      %223 = vmatpush1.msra.mxu0 %v75
      %224 = vmatprep.subr.mxu0 %v80
      %225 = vmatpush1.msra.mxu0 %v79
      %226 = vmatprep.subr.mxu0 %v84
      %227 = vmatpush1.msra.mxu0 %v83
      %228 = vmatprep.subr.mxu0 %v88
      %229 = vmatpush1.msra.mxu0 %v87
      %230 = vmatprep.subr.mxu0 %v92
      %231 = vmatpush1.msra.mxu0 %v91
      %232 = vmatprep.subr.mxu0 %v96
      %233 = vmatpush1.msra.mxu0 %v95
      %234 = vmatprep.subr.mxu0 %v100
      %235 = vmatpush1.msra.mxu0 %v99
      %236 = vmatprep.subr.mxu0 %v104
      %237 = vmatpush1.msra.mxu0 %v103
      %238 = vmatprep.subr.mxu0 %v108
      %239 = vmatpush1.msra.mxu0 %v107
      %240 = vmatprep.subr.mxu0 %v112
      %241 = vmatpush1.msra.mxu0 %v111
      %242 = vmatprep.subr.mxu0 %v116
      %243 = vmatpush1.msra.mxu0 %v115
      %244 = vmatprep.subr.mxu0 %v120
      %245 = vmatpush1.msra.mxu0 %v119
      %246 = vmatprep.subr.mxu0 %v124
      %247 = vmatpush1.msra.mxu0 %v123
      %248 = vmatprep.subr.mxu0 %v128
      %249 = vmatpush1.msra.mxu0 %v127
      %250 = vmatprep.subr.mxu0 0.0
      %251 = vmatpush1.msra.mxu0 0.0
      %252 = vmatprep.subr.mxu0 0.0
      %253 = vmatpush1.msra.mxu0 0.0
      %254 = vmatprep.subr.mxu0 0.0
      %255 = vmatpush1.msra.mxu0 0.0
      %256 = vmatprep.subr.mxu0 0.0
      %257 = vmatpush1.msra.mxu0 0.0
      %258 = vmatprep.subr.mxu0 0.0
      %259 = vmatpush1.msra.mxu0 0.0
      %260 = vmatprep.subr.mxu0 0.0
      %261 = vmatpush1.msra.mxu0 0.0
      %262 = vmatprep.subr.mxu0 0.0
      %263 = vmatpush1.msra.mxu0 0.0
      %264 = vmatprep.subr.mxu0 0.0
      %265 = vmatpush1.msra.mxu0 0.0
      %266 = vmatprep.subr.mxu0 0.0
      %267 = vmatpush1.msra.mxu0 0.0
      %268 = vmatprep.subr.mxu0 0.0
      %269 = vmatpush1.msra.mxu0 0.0
      %270 = vmatprep.subr.mxu0 0.0
      %271 = vmatpush1.msra.mxu0 0.0
      %272 = vmatprep.subr.mxu0 0.0
      %273 = vmatpush1.msra.mxu0 0.0
      %274 = vmatprep.subr.mxu0 0.0
      %275 = vmatpush1.msra.mxu0 0.0
      %276 = vmatprep.subr.mxu0 0.0
      %277 = vmatpush1.msra.mxu0 0.0
      %278 = vmatprep.subr.mxu0 0.0
      %279 = vmatpush1.msra.mxu0 0.0
      %280 = vmatprep.subr.mxu0 0.0
      %281 = vmatpush1.msra.mxu0 0.0
      %282 = vmatprep.mubr.f32.mxu0 0.0
      %283 = vmatmul.mubr.f32.gmra.mrb[0].mxu0 %v137
      %v284 = vpop.f32.mrb[0].mxu0
      %v285 = vadd.f32 0.0, %v284
      %v286 = vpop.f32.mrb[0].mxu0
      %v287 = vadd.f32 0.0, %v286
      %288 = vdwg.mxu0
      %v289 = vadd.f32 %v143, %v214
      %v290 = vadd.f32 %v144, %v216
      %v291 = vadd.f32 %v145, %v285
      %v292 = vadd.f32 %v146, %v287
      %v293 = vxor.u32 %v289, 2147483648
      %v294 = vmul.f32 %v293, 1.442695
      %v295 = vpow.pop %v294
      %v296 = vadd.f32 %v295, 1.0
      %v297 = vrcp.pop %v296
      %v298 = vmul.f32 1.0, %v297
      %v299 = vxor.u32 %v290, 2147483648
      %v300 = vmul.f32 %v299, 1.442695
      %v301 = vpow.pop %v300
      %v302 = vadd.f32 %v301, 1.0
      %v303 = vrcp.pop %v302
      %v304 = vmul.f32 1.0, %v303
      %v305 = vtanh.pop %v291
      %v306 = vxor.u32 %v292, 2147483648
      %v307 = vmul.f32 %v306, 1.442695
      %v308 = vpow.pop %v307
      %v309 = vadd.f32 %v308, 1.0
      %v310 = vrcp.pop %v309
      %v311 = vmul.f32 1.0, %v310
      %v312 = vmul.f32 %v304, %v138
      %v313 = vmul.f32 %v298, %v305
      %v314 = vadd.f32 %v312, %v313
      %v315 = vtanh.pop %v314
      %v316 = vmul.f32 %v311, %v315
      %s317 = smul.u32 %s139, 8
      %s318 = scalar_lea.vmem [#allocation4], %s317
      %319 = vst [vmem:[%s318] sm:$0xff] %v316
      %s320 = sadd.s32 %s139, 1
      %s321 = smul.u32 %s320, 4
      %s322 = smul.addr %s321, 8
      %s323 = scalar_lea.vmem [#allocation5], %s322
      %v324 = vld [vmem:[%s323] sm:$0xff]
      %v325 = vld [vmem:[%s323 + $0x8] sm:$0xff]
      %v326 = vld [vmem:[%s323 + $0x10] sm:$0xff]
      %v327 = vld [vmem:[%s323 + $0x18] sm:$0xff]
      %328 = vmatprep.subr.mxu0 %v66
      %329 = vmatpush1.msra.mxu0 %v65
      %330 = vmatprep.subr.mxu0 %v70
      %331 = vmatpush1.msra.mxu0 %v69
      %332 = vmatprep.subr.mxu0 %v74
      %333 = vmatpush1.msra.mxu0 %v73
      %334 = vmatprep.subr.mxu0 %v78
      %335 = vmatpush1.msra.mxu0 %v77
      %336 = vmatprep.subr.mxu0 %v82
      %337 = vmatpush1.msra.mxu0 %v81
      %338 = vmatprep.subr.mxu0 %v86
      %339 = vmatpush1.msra.mxu0 %v85
      %340 = vmatprep.subr.mxu0 %v90
      %341 = vmatpush1.msra.mxu0 %v89
      %342 = vmatprep.subr.mxu0 %v94
      %343 = vmatpush1.msra.mxu0 %v93
      %344 = vmatprep.subr.mxu0 %v98
      %345 = vmatpush1.msra.mxu0 %v97
      %346 = vmatprep.subr.mxu0 %v102
      %347 = vmatpush1.msra.mxu0 %v101
      %348 = vmatprep.subr.mxu0 %v106
      %349 = vmatpush1.msra.mxu0 %v105
      %350 = vmatprep.subr.mxu0 %v110
      %351 = vmatpush1.msra.mxu0 %v109
      %352 = vmatprep.subr.mxu0 %v114
      %353 = vmatpush1.msra.mxu0 %v113
      %354 = vmatprep.subr.mxu0 %v118
      %355 = vmatpush1.msra.mxu0 %v117
      %356 = vmatprep.subr.mxu0 %v122
      %357 = vmatpush1.msra.mxu0 %v121
      %358 = vmatprep.subr.mxu0 %v126
      %359 = vmatpush1.msra.mxu0 %v125
      %360 = vmatprep.subr.mxu0 0.0
      %361 = vmatpush1.msra.mxu0 0.0
      %362 = vmatprep.subr.mxu0 0.0
      %363 = vmatpush1.msra.mxu0 0.0
      %364 = vmatprep.subr.mxu0 0.0
      %365 = vmatpush1.msra.mxu0 0.0
      %366 = vmatprep.subr.mxu0 0.0
      %367 = vmatpush1.msra.mxu0 0.0
      %368 = vmatprep.subr.mxu0 0.0
      %369 = vmatpush1.msra.mxu0 0.0
      %370 = vmatprep.subr.mxu0 0.0
      %371 = vmatpush1.msra.mxu0 0.0
      %372 = vmatprep.subr.mxu0 0.0
      %373 = vmatpush1.msra.mxu0 0.0
      %374 = vmatprep.subr.mxu0 0.0
      %375 = vmatpush1.msra.mxu0 0.0
      %376 = vmatprep.subr.mxu0 0.0
      %377 = vmatpush1.msra.mxu0 0.0
      %378 = vmatprep.subr.mxu0 0.0
      %379 = vmatpush1.msra.mxu0 0.0
      %380 = vmatprep.subr.mxu0 0.0
      %381 = vmatpush1.msra.mxu0 0.0
      %382 = vmatprep.subr.mxu0 0.0
      %383 = vmatpush1.msra.mxu0 0.0
      %384 = vmatprep.subr.mxu0 0.0
      %385 = vmatpush1.msra.mxu0 0.0
      %386 = vmatprep.subr.mxu0 0.0
      %387 = vmatpush1.msra.mxu0 0.0
      %388 = vmatprep.subr.mxu0 0.0
      %389 = vmatpush1.msra.mxu0 0.0
      %390 = vmatprep.subr.mxu0 0.0
      %391 = vmatpush1.msra.mxu0 0.0
      %392 = vmatprep.mubr.f32.mxu0 0.0
      %393 = vmatmul.mubr.f32.gmra.mrb[0].mxu0 %v316
      %v394 = vpop.f32.mrb[0].mxu0
      %v395 = vadd.f32 0.0, %v394
      %v396 = vpop.f32.mrb[0].mxu0
      %v397 = vadd.f32 0.0, %v396
      %398 = vdwg.mxu0
      %399 = vmatprep.subr.mxu0 %v68
      %400 = vmatpush1.msra.mxu0 %v67
      %401 = vmatprep.subr.mxu0 %v72
      %402 = vmatpush1.msra.mxu0 %v71
      %403 = vmatprep.subr.mxu0 %v76
      %404 = vmatpush1.msra.mxu0 %v75
      %405 = vmatprep.subr.mxu0 %v80
      %406 = vmatpush1.msra.mxu0 %v79
      %407 = vmatprep.subr.mxu0 %v84
      %408 = vmatpush1.msra.mxu0 %v83
      %409 = vmatprep.subr.mxu0 %v88
      %410 = vmatpush1.msra.mxu0 %v87
      %411 = vmatprep.subr.mxu0 %v92
      %412 = vmatpush1.msra.mxu0 %v91
      %413 = vmatprep.subr.mxu0 %v96
      %414 = vmatpush1.msra.mxu0 %v95
      %415 = vmatprep.subr.mxu0 %v100
      %416 = vmatpush1.msra.mxu0 %v99
      %417 = vmatprep.subr.mxu0 %v104
      %418 = vmatpush1.msra.mxu0 %v103
      %419 = vmatprep.subr.mxu0 %v108
      %420 = vmatpush1.msra.mxu0 %v107
      %421 = vmatprep.subr.mxu0 %v112
      %422 = vmatpush1.msra.mxu0 %v111
      %423 = vmatprep.subr.mxu0 %v116
      %424 = vmatpush1.msra.mxu0 %v115
      %425 = vmatprep.subr.mxu0 %v120
      %426 = vmatpush1.msra.mxu0 %v119
      %427 = vmatprep.subr.mxu0 %v124
      %428 = vmatpush1.msra.mxu0 %v123
      %429 = vmatprep.subr.mxu0 %v128
      %430 = vmatpush1.msra.mxu0 %v127
      %431 = vmatprep.subr.mxu0 0.0
      %432 = vmatpush1.msra.mxu0 0.0
      %433 = vmatprep.subr.mxu0 0.0
      %434 = vmatpush1.msra.mxu0 0.0
      %435 = vmatprep.subr.mxu0 0.0
      %436 = vmatpush1.msra.mxu0 0.0
      %437 = vmatprep.subr.mxu0 0.0
      %438 = vmatpush1.msra.mxu0 0.0
      %439 = vmatprep.subr.mxu0 0.0
      %440 = vmatpush1.msra.mxu0 0.0
      %441 = vmatprep.subr.mxu0 0.0
      %442 = vmatpush1.msra.mxu0 0.0
      %443 = vmatprep.subr.mxu0 0.0
      %444 = vmatpush1.msra.mxu0 0.0
      %445 = vmatprep.subr.mxu0 0.0
      %446 = vmatpush1.msra.mxu0 0.0
      %447 = vmatprep.subr.mxu0 0.0
      %448 = vmatpush1.msra.mxu0 0.0
      %449 = vmatprep.subr.mxu0 0.0
      %450 = vmatpush1.msra.mxu0 0.0
      %451 = vmatprep.subr.mxu0 0.0
      %452 = vmatpush1.msra.mxu0 0.0
      %453 = vmatprep.subr.mxu0 0.0
      %454 = vmatpush1.msra.mxu0 0.0
      %455 = vmatprep.subr.mxu0 0.0
      %456 = vmatpush1.msra.mxu0 0.0
      %457 = vmatprep.subr.mxu0 0.0
      %458 = vmatpush1.msra.mxu0 0.0
      %459 = vmatprep.subr.mxu0 0.0
      %460 = vmatpush1.msra.mxu0 0.0
      %461 = vmatprep.subr.mxu0 0.0
      %462 = vmatpush1.msra.mxu0 0.0
      %463 = vmatprep.mubr.f32.mxu0 0.0
      %464 = vmatmul.mubr.f32.gmra.mrb[0].mxu0 %v316
      %v465 = vpop.f32.mrb[0].mxu0
      %v466 = vadd.f32 0.0, %v465
      %v467 = vpop.f32.mrb[0].mxu0
      %v468 = vadd.f32 0.0, %v467
      %469 = vdwg.mxu0
      %v470 = vadd.f32 %v324, %v395
      %v471 = vadd.f32 %v325, %v397
      %v472 = vadd.f32 %v326, %v466
      %v473 = vadd.f32 %v327, %v468
      %v474 = vxor.u32 %v470, 2147483648
      %v475 = vmul.f32 %v474, 1.442695
      %v476 = vpow.pop %v475
      %v477 = vadd.f32 %v476, 1.0
      %v478 = vrcp.pop %v477
      %v479 = vmul.f32 1.0, %v478
      %v480 = vxor.u32 %v471, 2147483648
      %v481 = vmul.f32 %v480, 1.442695
      %v482 = vpow.pop %v481
      %v483 = vadd.f32 %v482, 1.0
      %v484 = vrcp.pop %v483
      %v485 = vmul.f32 1.0, %v484
      %v486 = vtanh.pop %v472
      %v487 = vxor.u32 %v473, 2147483648
      %v488 = vmul.f32 %v487, 1.442695
      %v489 = vpow.pop %v488
      %v490 = vadd.f32 %v489, 1.0
      %v491 = vrcp.pop %v490
      %v492 = vmul.f32 1.0, %v491
      %v493 = vmul.f32 %v485, %v314
      %v494 = vmul.f32 %v479, %v486
      %v495 = vadd.f32 %v493, %v494
      %v496 = vtanh.pop %v495
      %v497 = vmul.f32 %v492, %v496
      %s498 = smul.u32 %s320, 8
      %s499 = scalar_lea.vmem [#allocation4], %s498
      %500 = vst [vmem:[%s499] sm:$0xff] %v497
    $region38: #{tpu_custom_call.1} parent=1 // loop_footer
      %s136 = sadd.s32 1, %s132
    $region39: #{tpu_custom_call.1} parent=1 // loop_footer_branch
      %131 = sbr.rel target = $region35
    $region40: #{tpu_custom_call.1} parent=1 // loop_exit
      _
    %501 = vst [vmem:[#allocation2] sm:$0xff] %v137
    %502 = vst [vmem:[#allocation3] sm:$0xff] %v138
    %v503 = vld [vmem:[#allocation10] sm:$0xff]
    %v504 = vld [vmem:[#allocation10 + $0x8] sm:$0xff]
    %v505 = vld [vmem:[#allocation10 + $0x10] sm:$0xff]
    %v506 = vld [vmem:[#allocation10 + $0x18] sm:$0xff]
    %v507 = vld [vmem:[#allocation10 + $0x20] sm:$0xff]
    %v508 = vld [vmem:[#allocation10 + $0x28] sm:$0xff]
    %v509 = vld [vmem:[#allocation10 + $0x30] sm:$0xff]
    %v510 = vld [vmem:[#allocation10 + $0x38] sm:$0xff]
    %v511 = vld [vmem:[#allocation10 + $0x40] sm:$0xff]
    %v512 = vld [vmem:[#allocation10 + $0x48] sm:$0xff]
    %v513 = vld [vmem:[#allocation10 + $0x50] sm:$0xff]
    %v514 = vld [vmem:[#allocation10 + $0x58] sm:$0xff]
    %v515 = vld [vmem:[#allocation10 + $0x60] sm:$0xff]
    %v516 = vld [vmem:[#allocation10 + $0x68] sm:$0xff]
    %v517 = vld [vmem:[#allocation10 + $0x70] sm:$0xff]
    %v518 = vld [vmem:[#allocation10 + $0x78] sm:$0xff]
    %v519 = vld [vmem:[#allocation4] sm:$0xff]
    %v520 = vld [vmem:[#allocation4 + $0x8] sm:$0xff]
    %v521 = vld [vmem:[#allocation4 + $0x10] sm:$0xff]
    %v522 = vld [vmem:[#allocation4 + $0x18] sm:$0xff]
    %v523 = vld [vmem:[#allocation4 + $0x20] sm:$0xff]
    %v524 = vld [vmem:[#allocation4 + $0x28] sm:$0xff]
    %v525 = vld [vmem:[#allocation4 + $0x30] sm:$0xff]
    %v526 = vld [vmem:[#allocation4 + $0x38] sm:$0xff]
    %v527 = vld [vmem:[%s3] sm:$0x1]
    %v529 = vlaneseq
    %v530 = vshrl.u32 %v529, 7
    %v531 = vsub.s32 0, %v530
    %v532 = vrot.slane %v527, %v531
    %534 = vmatprep.subr.mxu0 0.0
    %535 = vmatpush1.msra.mxu0 %v503
    %536 = vmatprep.subr.mxu0 0.0
    %537 = vmatpush1.msra.mxu0 %v504
    %538 = vmatprep.subr.mxu0 0.0
    %539 = vmatpush1.msra.mxu0 %v505
    %540 = vmatprep.subr.mxu0 0.0
    %541 = vmatpush1.msra.mxu0 %v506
    %542 = vmatprep.subr.mxu0 0.0
    %543 = vmatpush1.msra.mxu0 %v507
    %544 = vmatprep.subr.mxu0 0.0
    %545 = vmatpush1.msra.mxu0 %v508
    %546 = vmatprep.subr.mxu0 0.0
    %547 = vmatpush1.msra.mxu0 %v509
    %548 = vmatprep.subr.mxu0 0.0
    %549 = vmatpush1.msra.mxu0 %v510
    %550 = vmatprep.subr.mxu0 0.0
    %551 = vmatpush1.msra.mxu0 %v511
    %552 = vmatprep.subr.mxu0 0.0
    %553 = vmatpush1.msra.mxu0 %v512
    %554 = vmatprep.subr.mxu0 0.0
    %555 = vmatpush1.msra.mxu0 %v513
    %556 = vmatprep.subr.mxu0 0.0
    %557 = vmatpush1.msra.mxu0 %v514
    %558 = vmatprep.subr.mxu0 0.0
    %559 = vmatpush1.msra.mxu0 %v515
    %560 = vmatprep.subr.mxu0 0.0
    %561 = vmatpush1.msra.mxu0 %v516
    %562 = vmatprep.subr.mxu0 0.0
    %563 = vmatpush1.msra.mxu0 %v517
    %564 = vmatprep.subr.mxu0 0.0
    %565 = vmatpush1.msra.mxu0 %v518
    %566 = vmatprep.subr.mxu0 0.0
    %567 = vmatpush1.msra.mxu0 0.0
    %568 = vmatprep.subr.mxu0 0.0
    %569 = vmatpush1.msra.mxu0 0.0
    %570 = vmatprep.subr.mxu0 0.0
    %571 = vmatpush1.msra.mxu0 0.0
    %572 = vmatprep.subr.mxu0 0.0
    %573 = vmatpush1.msra.mxu0 0.0
    %574 = vmatprep.subr.mxu0 0.0
    %575 = vmatpush1.msra.mxu0 0.0
    %576 = vmatprep.subr.mxu0 0.0
    %577 = vmatpush1.msra.mxu0 0.0
    %578 = vmatprep.subr.mxu0 0.0
    %579 = vmatpush1.msra.mxu0 0.0
    %580 = vmatprep.subr.mxu0 0.0
    %581 = vmatpush1.msra.mxu0 0.0
    %582 = vmatprep.subr.mxu0 0.0
    %583 = vmatpush1.msra.mxu0 0.0
    %584 = vmatprep.subr.mxu0 0.0
    %585 = vmatpush1.msra.mxu0 0.0
    %586 = vmatprep.subr.mxu0 0.0
    %587 = vmatpush1.msra.mxu0 0.0
    %588 = vmatprep.subr.mxu0 0.0
    %589 = vmatpush1.msra.mxu0 0.0
    %590 = vmatprep.subr.mxu0 0.0
    %591 = vmatpush1.msra.mxu0 0.0
    %592 = vmatprep.subr.mxu0 0.0
    %593 = vmatpush1.msra.mxu0 0.0
    %594 = vmatprep.subr.mxu0 0.0
    %595 = vmatpush1.msra.mxu0 0.0
    %596 = vmatprep.subr.mxu0 0.0
    %597 = vmatpush1.msra.mxu0 0.0
    %598 = vmatprep.mubr.f32.mxu0 0.0
    %599 = vmatmul.mubr.f32.gmra.mrb[0].mxu0 %v519
    %v600 = vpop.f32.mrb[0].mxu0
    %v601 = vadd.f32 %v532, %v600
    %v602 = vpop.f32.mrb[0].mxu0
    %603 = vmatprep.mubr.f32.mxu0 0.0
    %604 = vmatmul.mubr.f32.gmra.mrb[0].mxu0 %v520
    %v605 = vpop.f32.mrb[0].mxu0
    %v606 = vadd.f32 %v532, %v605
    %v607 = vpop.f32.mrb[0].mxu0
    %608 = vmatprep.mubr.f32.mxu0 0.0
    %609 = vmatmul.mubr.f32.gmra.mrb[0].mxu0 %v521
    %v610 = vpop.f32.mrb[0].mxu0
    %v611 = vadd.f32 %v532, %v610
    %v612 = vpop.f32.mrb[0].mxu0
    %613 = vmatprep.mubr.f32.mxu0 0.0
    %614 = vmatmul.mubr.f32.gmra.mrb[0].mxu0 %v522
    %v615 = vpop.f32.mrb[0].mxu0
    %v616 = vadd.f32 %v532, %v615
    %v617 = vpop.f32.mrb[0].mxu0
    %618 = vmatprep.mubr.f32.mxu0 0.0
    %619 = vmatmul.mubr.f32.gmra.mrb[0].mxu0 %v523
    %v620 = vpop.f32.mrb[0].mxu0
    %v621 = vadd.f32 %v532, %v620
    %v622 = vpop.f32.mrb[0].mxu0
    %623 = vmatprep.mubr.f32.mxu0 0.0
    %624 = vmatmul.mubr.f32.gmra.mrb[0].mxu0 %v524
    %v625 = vpop.f32.mrb[0].mxu0
    %v626 = vadd.f32 %v532, %v625
    %v627 = vpop.f32.mrb[0].mxu0
    %628 = vmatprep.mubr.f32.mxu0 0.0
    %629 = vmatmul.mubr.f32.gmra.mrb[0].mxu0 %v525
    %v630 = vpop.f32.mrb[0].mxu0
    %v631 = vadd.f32 %v532, %v630
    %v632 = vpop.f32.mrb[0].mxu0
    %633 = vmatprep.mubr.f32.mxu0 0.0
    %634 = vmatmul.mubr.f32.gmra.mrb[0].mxu0 %v526
    %v635 = vpop.f32.mrb[0].mxu0
    %v636 = vadd.f32 %v532, %v635
    %v637 = vpop.f32.mrb[0].mxu0
    %638 = vdwg.mxu0
    %v639 = vxor.u32 %v601, 2147483648
    %v640 = vxor.u32 %v606, 2147483648
    %v641 = vxor.u32 %v611, 2147483648
    %v642 = vxor.u32 %v616, 2147483648
    %v643 = vxor.u32 %v621, 2147483648
    %v644 = vxor.u32 %v626, 2147483648
    %v645 = vxor.u32 %v631, 2147483648
    %v646 = vxor.u32 %v636, 2147483648
    %v647 = vmul.f32 %v639, 1.442695
    %v648 = vpow.pop %v647
    %v649 = vmul.f32 %v640, 1.442695
    %v650 = vpow.pop %v649
    %v651 = vmul.f32 %v641, 1.442695
    %v652 = vpow.pop %v651
    %v653 = vmul.f32 %v642, 1.442695
    %v654 = vpow.pop %v653
    %v655 = vmul.f32 %v643, 1.442695
    %v656 = vpow.pop %v655
    %v657 = vmul.f32 %v644, 1.442695
    %v658 = vpow.pop %v657
    %v659 = vmul.f32 %v645, 1.442695
    %v660 = vpow.pop %v659
    %v661 = vmul.f32 %v646, 1.442695
    %v662 = vpow.pop %v661
    %v663 = vadd.f32 %v648, 1.0
    %v664 = vadd.f32 %v650, 1.0
    %v665 = vadd.f32 %v652, 1.0
    %v666 = vadd.f32 %v654, 1.0
    %v667 = vadd.f32 %v656, 1.0
    %v668 = vadd.f32 %v658, 1.0
    %v669 = vadd.f32 %v660, 1.0
    %v670 = vadd.f32 %v662, 1.0
    %v671 = vrcp.pop %v663
    %v672 = vmul.f32 1.0, %v671
    %v673 = vrcp.pop %v664
    %v674 = vmul.f32 1.0, %v673
    %v675 = vrcp.pop %v665
    %v676 = vmul.f32 1.0, %v675
    %v677 = vrcp.pop %v666
    %v678 = vmul.f32 1.0, %v677
    %v679 = vrcp.pop %v667
    %v680 = vmul.f32 1.0, %v679
    %v681 = vrcp.pop %v668
    %v682 = vmul.f32 1.0, %v681
    %v683 = vrcp.pop %v669
    %v684 = vmul.f32 1.0, %v683
    %v685 = vrcp.pop %v670
    %v686 = vmul.f32 1.0, %v685
    %687 = vst [vmem:[#allocation11] sm:$0xff] %v672
    %688 = vst [vmem:[#allocation11 + $0x8] sm:$0xff] %v674
    %689 = vst [vmem:[#allocation11 + $0x10] sm:$0xff] %v676
    %690 = vst [vmem:[#allocation11 + $0x18] sm:$0xff] %v678
    %691 = vst [vmem:[#allocation11 + $0x20] sm:$0xff] %v680
    %692 = vst [vmem:[#allocation11 + $0x28] sm:$0xff] %v682
    %693 = vst [vmem:[#allocation11 + $0x30] sm:$0xff] %v684
    %694 = vst [vmem:[#allocation11 + $0x38] sm:$0xff] %v686
    // Predicated region
    $region41: #{tpu_custom_call.1} parent=1 // pred_check
      _
    $region42: #{tpu_custom_call.1} parent=1 // pred_check_branch
      %696 = sbr.rel (0) target = $region44
    $region43: #{tpu_custom_call.1} parent=1 // pred_region
      %s698 = ssub.s32 1024, 1024
      %699 = vsyncadd [#allocation7], %s698
      %s700 = sshll.u32 [#allocation11], 4
      %s701 = int_to_ptr.vmem [resolvable:$true] %s700
      %706 = dma.vmem_to_hbm [thread:$0]  %s701, 1024, %s4, [#allocation7], 128, 128, 8
    $region44: #{tpu_custom_call.1} parent=1 // pred_fallthru
      _
    // Predicated region
    $region45: #{tpu_custom_call.1} parent=1 // pred_check
      _
    $region46: #{tpu_custom_call.1} parent=1 // pred_check_branch
      %708 = sbr.rel (0) target = $region48
    $region47: #{tpu_custom_call.1} parent=1 // pred_region
      %709 = dma.done [#allocation7], 1024
    $region48: #{tpu_custom_call.1} parent=1 // pred_fallthru
      _
    %710 = vsyncpa [#allocation6], 1
    %711 = vsyncpa [#allocation9], 1
    %712 = vsyncpa [#allocation7], 1

</llo_original>
